<compile_context>
chip_gen: v6e
topology: v6e:2x2x1
jax: 0.10.0
libtpu: 0.0.40
codegen_flags: <defaults>
</compile_context>

<pallas_src>
import functools

import jax
import jax.numpy as jnp
from jax.experimental import pallas as pl
from jax.experimental.pallas import tpu as pltpu

BN_EPS = 1e-5  # PyTorch BatchNorm1d default eps


# ---------------------------------------------------------------------------
# Kernel
# ---------------------------------------------------------------------------
def _resblock_kernel(out_p,
                     x_ref,
                     scale_in_ref, off_in_ref,     # start_norm BN folded to affine
                     wcat_ref, bcat_ref,           # [shortcut | A-L1(+BN) | B-L1(+BN)]
                     w2_ref, b2_ref,               # fused second layer (+shake consts)
                     out_ref):
    x = x_ref[...]

    # start_norm: BatchNorm1d(in) + ReLU, BN pre-folded to affine (f32 math).
    h = jnp.maximum(x * scale_in_ref[...] + off_in_ref[...], 0.0)
    hb = h.astype(wcat_ref.dtype)

    # Fused first stage: one MXU matmul for shortcut + both branch first layers.
    y = jnp.dot(hb, wcat_ref[...], preferred_element_type=jnp.float32) + bcat_ref[...]

    residual = y[:, :out_p]                       # shortcut output (lane-aligned slice)
    z = jnp.maximum(y[:, out_p:], 0.0)            # branch BN already folded; ReLU only
    zb = z.astype(w2_ref.dtype)

    # Fused second stage: computes shake_drop_coeff*0.5*(x1 + x2) in one contraction.
    y2 = jnp.dot(zb, w2_ref[...], preferred_element_type=jnp.float32) + b2_ref[...]

    out_ref[...] = (y2 + residual).astype(out_ref.dtype)


# ---------------------------------------------------------------------------
# One-time wrapper-side parameter preparation (exact algebra, eval mode).
# Hoisted OUT of the per-call path -- call once at model build time.
# ---------------------------------------------------------------------------
def _prep_params(params, shake_drop_coeff, out_p, matmul_dtype=jnp.bfloat16):
    (g_in, b_in, m_in, v_in, w_sc, b_sc,
     w1a, b1a, g1a, bt1a, m1a, v1a, w2a, b2a,
     w1b, b1b, g1b, bt1b, m1b, v1b, w2b, b2b) = params

    # start_norm BN -> affine
    scale_in = g_in * jax.lax.rsqrt(v_in + BN_EPS)
    off_in = b_in - m_in * scale_in

    # Fold mid-branch BN (eval running stats) into the first Linear of each branch.
    def fold_bn(w, b, g, bt, m, v):
        s = g * jax.lax.rsqrt(v + BN_EPS)          # (1, OUT)
        return w * s, (b - m) * s + bt

    w1a_f, b1a_f = fold_bn(w1a, b1a, g1a, bt1a, m1a, v1a)
    w1b_f, b1b_f = fold_bn(w1b, b1b, g1b, bt1b, m1b, v1b)

    def pad_cols(a, width):
        return jnp.pad(a, ((0, 0), (0, width - a.shape[1])))

    def pad_rows_cols(a, rows, cols):
        return jnp.pad(a, ((0, rows - a.shape[0]), (0, cols - a.shape[1])))

    # Fused first-stage weights: (IN, 3*out_p), each segment zero-padded to out_p lanes.
    wcat = jnp.concatenate(
        [pad_cols(w_sc, out_p), pad_cols(w1a_f, out_p), pad_cols(w1b_f, out_p)], axis=1)
    bcat = jnp.concatenate(
        [pad_cols(b_sc, out_p), pad_cols(b1a_f, out_p), pad_cols(b1b_f, out_p)], axis=1)

    # Fused second stage with shake-shake (0.5) and shake-drop eval coeff folded in.
    # autoPyTorch eval path: shake_get_alpha_beta -> alpha=beta=0.5; shake_drop eval
    # scales by (bl + alpha - bl*alpha) with bl = pl, which the caller passes in.
    s = 0.5 * shake_drop_coeff
    w2 = jnp.concatenate(
        [pad_rows_cols(s * w2a, out_p, out_p), pad_rows_cols(s * w2b, out_p, out_p)],
        axis=0)                                    # (2*out_p, out_p)
    b2 = pad_cols(s * (b2a + b2b), out_p)

    return (scale_in.astype(jnp.float32), off_in.astype(jnp.float32),
            wcat.astype(matmul_dtype), bcat.astype(jnp.float32),
            w2.astype(matmul_dtype), b2.astype(jnp.float32))


def prepare_resblock_params(params, shake_drop_coeff, matmul_dtype=jnp.bfloat16):
    """Run once. Returns (prepped_tuple, OUT_P)."""
    out_features = params[4].shape[1]               # w_sc is (IN, OUT)
    out_p = ((out_features + 127) // 128) * 128     # lane-dense output slab
    prepped = _prep_params(params, shake_drop_coeff, out_p, matmul_dtype)
    return prepped, out_p


# ---------------------------------------------------------------------------
# Chip-aware budgets / tile selection
# ---------------------------------------------------------------------------
def _vmem_budget_bytes():
    phys = 64 * 2**20                               # conservative default (v7x)
    try:
        info = pltpu.get_tpu_info()
        phys = int(getattr(info, "vmem_capacity_bytes", phys) or phys)
    except Exception:
        pass
    # Leave ~25% headroom; never assume more than 100 MiB even on 128 MiB parts.
    # -> ~48 MiB on v7x (64 MiB physical), ~96-100 MiB on v5e/v6e (128 MiB).
    return int(min(100 * 2**20, (phys * 3) // 4))


def _choose_bm(B, in_f, out_p, out_itemsize, weight_bytes, vmem_budget):
    """Pick batch tile: >=2 grid steps when B >= 32, bm % 16 == 0, fits VMEM."""
    # Per-row VMEM cost: double-buffered x (f32) + double-buffered out block
    # + in-kernel intermediates (h/hb, y f32 = 3*OUT_P, z/zb, y2, residual).
    per_row = (2 * in_f * 4
               + 2 * out_p * out_itemsize
               + 6 * in_f
               + 32 * out_p)
    avail = max(vmem_budget - weight_bytes - 4 * 2**20, 1 * 2**20)
    max_bm = max(16, min(1024, ((avail // per_row) // 16) * 16))

    if B <= 32:
        return min(B, max_bm if max_bm >= B else B)   # tiny batch: single tile

    target = min(max_bm, max(16, B // 2))             # >=2 tiles -> megacore shards
    for n in range(2, B // 16 + 1):                   # prefer an exact split
        t = B // n
        if B % n == 0 and t % 16 == 0 and t <= target:
            return t
    return max(16, (target // 16) * 16)               # fallback: pad the batch


# ---------------------------------------------------------------------------
# Forward
# ---------------------------------------------------------------------------
def resblock_forward(x, prepped, out_features, *, out_dtype=jnp.float32,
                     keep_padded=False, bm=None):
    """prepped: output of prepare_resblock_params (computed once, reused)."""
    scale_in, off_in, wcat, bcat, w2, b2 = prepped
    B, IN = x.shape
    OUT_P = w2.shape[1]
    out_itemsize = jnp.dtype(out_dtype).itemsize

    weight_bytes = sum(int(p.size) * p.dtype.itemsize for p in prepped)
    vmem_budget = _vmem_budget_bytes()

    if bm is None:
        bm = _choose_bm(B, IN, OUT_P, out_itemsize, weight_bytes, vmem_budget)
    bm = max(1, min(bm, max(B, 1)))

    # Pad the batch to a tile multiple (handles arbitrary / odd B).
    n_steps = -(-B // bm)                           # ceil
    B_pad = n_steps * bm
    if B_pad != B:
        x = jnp.pad(x, ((0, B_pad - B), (0, 0)))
    grid = (n_steps,)

    # Constant (grid-invariant) operands: single-buffer to halve weight VMEM.
    def const_spec(arr):
        nd = arr.ndim
        return pl.BlockSpec(arr.shape, lambda i, _nd=nd: (0,) * _nd,
                            pipeline_mode=pl.Buffered(buffer_count=1))

    in_specs = [pl.BlockSpec((bm, IN), lambda i: (i, 0))]
    in_specs += [const_spec(p) for p in prepped]
    out_specs = pl.BlockSpec((bm, OUT_P), lambda i: (i, 0))

    kernel = functools.partial(_resblock_kernel, OUT_P)

    # Advisory cost estimate for the XLA scheduler.
    flops = 2 * B_pad * IN * (3 * OUT_P) + 2 * B_pad * (2 * OUT_P) * OUT_P
    bytes_accessed = (B_pad * IN * 4 + B_pad * OUT_P * out_itemsize + weight_bytes)
    cost = pl.CostEstimate(flops=flops, transcendentals=0,
                           bytes_accessed=bytes_accessed)

    out_padded = pl.pallas_call(
        kernel,
        out_shape=jax.ShapeDtypeStruct((B_pad, OUT_P), out_dtype),
        grid=grid,
        in_specs=in_specs,
        out_specs=out_specs,
        compiler_params=pltpu.CompilerParams(
            dimension_semantics=("parallel",),
            vmem_limit_bytes=vmem_budget),
        cost_estimate=cost,
    )(x, *prepped)

    # Keeping the padded (B, OUT_P) slab avoids an extra HBM read+write when the
    # consumer (e.g. the next ResBlock) can take lane-padded input directly.
    if keep_padded:
        return out_padded[:B]
    return out_padded[:B, :out_features]


# ---------------------------------------------------------------------------
# Deterministic synthetic parameter construction (no checkpoint loading).
# ---------------------------------------------------------------------------
def _init_linear(key, fan_in, fan_out):
    kw, kb = jax.random.split(key)
    lim = 1.0 / (fan_in ** 0.5)
    w = jax.random.uniform(kw, (fan_in, fan_out), jnp.float32, -lim, lim)  # (in, out)
    b = jax.random.uniform(kb, (1, fan_out), jnp.float32, -lim, lim)
    return w, b


def _init_bn(key, feat):
    k1, k2, k3, k4 = jax.random.split(key, 4)
    gamma = 1.0 + 0.1 * jax.random.normal(k1, (1, feat), jnp.float32)
    beta = 0.1 * jax.random.normal(k2, (1, feat), jnp.float32)
    mean = 0.1 * jax.random.normal(k3, (1, feat), jnp.float32)
    var = jax.random.uniform(k4, (1, feat), jnp.float32, 0.5, 1.5)
    return gamma, beta, mean, var


def _init_branch(key, fin, fout):
    k1, k2, k3 = jax.random.split(key, 3)
    w1, b1 = _init_linear(k1, fin, fout)
    g, bt, m, v = _init_bn(k2, fout)
    w2, b2 = _init_linear(k3, fout, fout)
    return [w1, b1, g, bt, m, v, w2, b2]


# ---------------------------------------------------------------------------
# References
# ---------------------------------------------------------------------------
def _resblock_reference(x, params, shake_drop_coeff):
    """Original module semantics (eval mode), pure f32."""
    (g_in, b_in, m_in, v_in, w_sc, b_sc,
     w1a, b1a, g1a, bt1a, m1a, v1a, w2a, b2a,
     w1b, b1b, g1b, bt1b, m1b, v1b, w2b, b2b) = params

    def bn_relu(z, g, b, m, v):
        return jnp.maximum((z - m) * (g / jnp.sqrt(v + BN_EPS)) + b, 0.0)

    h = bn_relu(x, g_in, b_in, m_in, v_in)
    residual = h @ w_sc + b_sc

    def branch(w1, b1, g, bt, m, v, w2, b2):
        y = h @ w1 + b1
        y = bn_relu(y, g, bt, m, v)
        return y @ w2 + b2

    x1 = branch(w1a, b1a, g1a, bt1a, m1a, v1a, w2a, b2a)
    x2 = branch(w1b, b1b, g1b, bt1b, m1b, v1b, w2b, b2b)
    y = shake_drop_coeff * (0.5 * x1 + 0.5 * x2)
    return y + residual


def _resblock_reference_prepped(x, prepped, out_p):
    """Same folded/padded/bf16 algebra as the kernel, in plain JAX (tight check)."""
    scale_in, off_in, wcat, bcat, w2, b2 = prepped
    h = jnp.maximum(x * scale_in + off_in, 0.0).astype(wcat.dtype)
    y = jnp.dot(h, wcat, preferred_element_type=jnp.float32) + bcat
    residual = y[:, :out_p]
    z = jnp.maximum(y[:, out_p:], 0.0).astype(w2.dtype)
    y2 = jnp.dot(z, w2, preferred_element_type=jnp.float32) + b2
    return y2 + residual


if __name__ == "__main__":
    # config = dict(num_groups=2, use_shake_shake=True, use_shake_drop=True,
    #               use_dropout=False, max_shake_drop_probability=0.5)
    # blocks_per_group=2, block_index=0, activation=nn.ReLU
    B, IN, OUT = 16, 16, 32
    block_index, blocks_per_group, num_groups = 0, 2, 2
    max_shake_drop_probability = 0.5

    num_blocks = blocks_per_group * num_groups
    min_prob_no_shake = 1.0 - max_shake_drop_probability
    # eval-mode shake_drop: bl = pl (expected value), alpha = 0.5
    pl_prob = 1.0 - ((block_index + 1) / num_blocks) * (1.0 - min_prob_no_shake)
    shake_drop_coeff = pl_prob + 0.5 - pl_prob * 0.5

    key = jax.random.PRNGKey(0)
    kx, kbn, ksc, kba, kbb = jax.random.split(key, 5)

    x = jax.random.normal(kx, (B, IN), jnp.float32)

    g_in, b_in, m_in, v_in = _init_bn(kbn, IN)
    w_sc, b_sc = _init_linear(ksc, IN, OUT)
    branch_a = _init_branch(kba, IN, OUT)
    branch_b = _init_branch(kbb, IN, OUT)

    params = [g_in, b_in, m_in, v_in, w_sc, b_sc] + branch_a + branch_b

    # One-time parameter preparation (hoisted out of the per-forward path).
    prepped, OUT_P = prepare_resblock_params(params, shake_drop_coeff)
    prepped = jax.block_until_ready(prepped)

    out = resblock_forward(x, prepped, OUT)
    out = jax.block_until_ready(out)
    assert out.shape == (B, OUT)

    # Tight check: identical fused/bf16 algebra evaluated with plain JAX ops.
    ref_tight = _resblock_reference_prepped(x, prepped, OUT_P)[:, :OUT]
    assert jnp.allclose(out, ref_tight, atol=1e-4, rtol=1e-4), \
        "kernel mismatch vs fused-algebra reference"

    # Sanity check vs the original f32 module semantics (bf16 matmul tolerance).
    ref_f32 = _resblock_reference(x, params, shake_drop_coeff)
    assert jnp.allclose(out, ref_f32, atol=0.2, rtol=0.05), \
        "kernel mismatch vs f32 module semantics"

    # TODO(synk): training-mode stochastic paths (Dropout, random shake alpha/beta,
    # Bernoulli bl) are not modeled; this implements the deterministic eval forward.
    # TODO(synk): for end-to-end wins at these tiny widths, fuse a whole group of
    # ResBlocks into one pallas_call (activation stays VMEM-resident across blocks).
    print("KERNEL_OK")
</pallas_src>

<mosaic_0001>
module attributes {stable_mosaic.version = 11 : i64} {
  func.func @_resblock_kernel(%arg0: i32, %arg1: memref<16x16xf32, #tpu.memory_space<vmem>>, %arg2: memref<1x16xf32, #tpu.memory_space<vmem>>, %arg3: memref<1x16xf32, #tpu.memory_space<vmem>>, %arg4: memref<16x384xbf16, #tpu.memory_space<vmem>>, %arg5: memref<1x384xf32, #tpu.memory_space<vmem>>, %arg6: memref<256x128xbf16, #tpu.memory_space<vmem>>, %arg7: memref<1x128xf32, #tpu.memory_space<vmem>>, %arg8: memref<16x128xf32, #tpu.memory_space<vmem>>) attributes {dimension_semantics = [#tpu.dimension_semantics<parallel>], iteration_bounds = array<i64: 1>, scalar_prefetch = 0 : i64, scratch_operands = 0 : i64, tpu.core_type = #tpu.core_type<tc>, window_params = [{transform_indices = @transform_0, window_bounds = array<i64: 16, 16>}, {pipeline_mode = #tpu.pipeline_mode<synchronous>, transform_indices = @transform_1, window_bounds = array<i64: 1, 16>}, {pipeline_mode = #tpu.pipeline_mode<synchronous>, transform_indices = @transform_2, window_bounds = array<i64: 1, 16>}, {pipeline_mode = #tpu.pipeline_mode<synchronous>, transform_indices = @transform_3, window_bounds = array<i64: 16, 384>}, {pipeline_mode = #tpu.pipeline_mode<synchronous>, transform_indices = @transform_4, window_bounds = array<i64: 1, 384>}, {pipeline_mode = #tpu.pipeline_mode<synchronous>, transform_indices = @transform_5, window_bounds = array<i64: 256, 128>}, {pipeline_mode = #tpu.pipeline_mode<synchronous>, transform_indices = @transform_6, window_bounds = array<i64: 1, 128>}, {transform_indices = @transform_7, window_bounds = array<i64: 16, 128>}]} {
    %c0 = arith.constant 0 : index
    %c0_0 = arith.constant 0 : index
    %0 = vector.load %arg1[%c0, %c0_0] : memref<16x16xf32, #tpu.memory_space<vmem>>, vector<16x16xf32>
    %c0_1 = arith.constant 0 : index
    %c0_2 = arith.constant 0 : index
    %1 = vector.load %arg2[%c0_1, %c0_2] : memref<1x16xf32, #tpu.memory_space<vmem>>, vector<1x16xf32>
    %2 = vector.broadcast %1 : vector<1x16xf32> to vector<16x16xf32>
    %3 = arith.mulf %0, %2 : vector<16x16xf32>
    %c0_3 = arith.constant 0 : index
    %c0_4 = arith.constant 0 : index
    %4 = vector.load %arg3[%c0_3, %c0_4] : memref<1x16xf32, #tpu.memory_space<vmem>>, vector<1x16xf32>
    %5 = vector.broadcast %4 : vector<1x16xf32> to vector<16x16xf32>
    %6 = arith.addf %3, %5 : vector<16x16xf32>
    %cst = arith.constant 0.000000e+00 : f32
    %7 = vector.broadcast %cst : f32 to vector<16x16xf32>
    %8 = arith.maximumf %6, %7 : vector<16x16xf32>
    %9 = arith.truncf %8 : vector<16x16xf32> to vector<16x16xbf16>
    %c0_5 = arith.constant 0 : index
    %c0_6 = arith.constant 0 : index
    %10 = vector.load %arg4[%c0_5, %c0_6] : memref<16x384xbf16, #tpu.memory_space<vmem>>, vector<16x384xbf16>
    %cst_7 = arith.constant dense<0.000000e+00> : vector<16x384xf32>
    %11 = tpu.matmul %9, %10, %cst_7 {dimension_numbers = #tpu.dot_dimension_numbers<[1], [0], [0], [1], [0, 0, 1, 1], [], []>} : vector<16x16xbf16>, vector<16x384xbf16>, vector<16x384xf32> -> vector<16x384xf32>
    %c0_8 = arith.constant 0 : index
    %c0_9 = arith.constant 0 : index
    %12 = vector.load %arg5[%c0_8, %c0_9] : memref<1x384xf32, #tpu.memory_space<vmem>>, vector<1x384xf32>
    %13 = vector.broadcast %12 : vector<1x384xf32> to vector<16x384xf32>
    %14 = arith.addf %11, %13 : vector<16x384xf32>
    %15 = vector.extract_strided_slice %14 {offsets = [0, 0], sizes = [16, 128], strides = [1, 1]} : vector<16x384xf32> to vector<16x128xf32>
    %16 = vector.extract_strided_slice %14 {offsets = [0, 128], sizes = [16, 256], strides = [1, 1]} : vector<16x384xf32> to vector<16x256xf32>
    %cst_10 = arith.constant 0.000000e+00 : f32
    %17 = vector.broadcast %cst_10 : f32 to vector<16x256xf32>
    %18 = arith.maximumf %16, %17 : vector<16x256xf32>
    %19 = arith.truncf %18 : vector<16x256xf32> to vector<16x256xbf16>
    %c0_11 = arith.constant 0 : index
    %c0_12 = arith.constant 0 : index
    %20 = vector.load %arg6[%c0_11, %c0_12] : memref<256x128xbf16, #tpu.memory_space<vmem>>, vector<256x128xbf16>
    %cst_13 = arith.constant dense<0.000000e+00> : vector<16x128xf32>
    %21 = tpu.matmul %19, %20, %cst_13 {dimension_numbers = #tpu.dot_dimension_numbers<[1], [0], [0], [1], [0, 0, 1, 1], [], []>} : vector<16x256xbf16>, vector<256x128xbf16>, vector<16x128xf32> -> vector<16x128xf32>
    %c0_14 = arith.constant 0 : index
    %c0_15 = arith.constant 0 : index
    %22 = vector.load %arg7[%c0_14, %c0_15] : memref<1x128xf32, #tpu.memory_space<vmem>>, vector<1x128xf32>
    %23 = vector.broadcast %22 : vector<1x128xf32> to vector<16x128xf32>
    %24 = arith.addf %21, %23 : vector<16x128xf32>
    %25 = arith.addf %24, %15 : vector<16x128xf32>
    %c0_16 = arith.constant 0 : index
    %c0_17 = arith.constant 0 : index
    %26 = vector.load %arg8[%c0_16, %c0_17] : memref<16x128xf32, #tpu.memory_space<vmem>>, vector<16x128xf32>
    tpu.vector_store %arg8[%c0_16, %c0_17], %25 {strides = array<i32>} : memref<16x128xf32, #tpu.memory_space<vmem>>, vector<16x128xf32>,
    return
  }
  func.func @transform_0(%arg0: i32) -> (i32, i32) {
    %c0_i32 = arith.constant 0 : i32
    %c0_i32_0 = arith.constant 0 : i32
    return %arg0, %c0_i32 : i32, i32
  }
  func.func @transform_1(%arg0: i32) -> (i32, i32) {
    %c0_i32 = arith.constant 0 : i32
    %c0_i32_0 = arith.constant 0 : i32
    %c0_i32_1 = arith.constant 0 : i32
    return %c0_i32, %c0_i32_0 : i32, i32
  }
  func.func @transform_2(%arg0: i32) -> (i32, i32) {
    %c0_i32 = arith.constant 0 : i32
    %c0_i32_0 = arith.constant 0 : i32
    %c0_i32_1 = arith.constant 0 : i32
    return %c0_i32, %c0_i32_0 : i32, i32
  }
  func.func @transform_3(%arg0: i32) -> (i32, i32) {
    %c0_i32 = arith.constant 0 : i32
    %c0_i32_0 = arith.constant 0 : i32
    %c0_i32_1 = arith.constant 0 : i32
    return %c0_i32, %c0_i32_0 : i32, i32
  }
  func.func @transform_4(%arg0: i32) -> (i32, i32) {
    %c0_i32 = arith.constant 0 : i32
    %c0_i32_0 = arith.constant 0 : i32
    %c0_i32_1 = arith.constant 0 : i32
    return %c0_i32, %c0_i32_0 : i32, i32
  }
  func.func @transform_5(%arg0: i32) -> (i32, i32) {
    %c0_i32 = arith.constant 0 : i32
    %c0_i32_0 = arith.constant 0 : i32
    %c0_i32_1 = arith.constant 0 : i32
    return %c0_i32, %c0_i32_0 : i32, i32
  }
  func.func @transform_6(%arg0: i32) -> (i32, i32) {
    %c0_i32 = arith.constant 0 : i32
    %c0_i32_0 = arith.constant 0 : i32
    %c0_i32_1 = arith.constant 0 : i32
    return %c0_i32, %c0_i32_0 : i32, i32
  }
  func.func @transform_7(%arg0: i32) -> (i32, i32) {
    %c0_i32 = arith.constant 0 : i32
    %c0_i32_0 = arith.constant 0 : i32
    return %arg0, %c0_i32 : i32, i32
  }
}

</mosaic_0001>

<llo_original>
// kernel: tpu_custom_call.1
$region0: #{tpu_custom_call.1}
  #allocation0 [shape = 'u32[]', space=smem, size = 0x4, offset = 0x4, fixed_abs, tag = 'smem constant byte address 0x4 - core index']
  #allocation1 [shape = 'u32[144,128]{1,0:T(1,128)}', space=vmem, size = 0x12000, scoped, tag = 'internal scratch']
  %s0 = inlined_call_operand.hbm [shape: f32[16,16], index: 0, kind: input, shape index: {}]
  %s1 = inlined_call_operand.vmem [shape: f32[1,16], index: 1, kind: input, shape index: {}]
  %s2 = inlined_call_operand.vmem [shape: f32[1,16], index: 2, kind: input, shape index: {}]
  %s3 = inlined_call_operand.hbm [shape: bf16[16,384], index: 3, kind: input, shape index: {}]
  %s4 = inlined_call_operand.vmem [shape: f32[1,384], index: 4, kind: input, shape index: {}]
  %s5 = inlined_call_operand.hbm [shape: bf16[256,128], index: 5, kind: input, shape index: {}]
  %s6 = inlined_call_operand.vmem [shape: f32[1,128], index: 6, kind: input, shape index: {}]
  %s7 = inlined_call_operand.hbm [shape: f32[16,128], index: 7, kind: output, shape index: {}]
  %s8 = sld [smem:[#allocation0]]
  $region50: #{tpu_custom_call.1} parent=0
    _
  %s10 = ssub.s32 1, %s8
  %s11 = scalar_select 0, %s10, %s8
  $region1: #{tpu_custom_call.1} parent=0
    #allocation2 [shape = 'u8[8192]{0}', space=vmem, size = 0x2000, scoped, tag = 'input window, operand 0, single buffered']
    #allocation3 [shape = 's32[1]{0}', space=sflag, size = 0x4, scoped, tag = 'scoped memory for tpu_custom_call.1']
    #allocation4 [shape = 's32[1]{0}', space=sflag, size = 0x4, scoped, tag = 'scoped memory for tpu_custom_call.1']
    #allocation5 [shape = 'u8[12288]{0}', space=vmem, size = 0x3000, scoped, tag = 'input window, operand 3, single buffered']
    #allocation6 [shape = 's32[1]{0}', space=sflag, size = 0x4, scoped, tag = 'scoped memory for tpu_custom_call.1']
    #allocation7 [shape = 'u8[65536]{0}', space=vmem, size = 0x10000, scoped, tag = 'input window, operand 5, single buffered']
    #allocation8 [shape = 'u8[8192]{0}', space=vmem, size = 0x2000, scoped, tag = 'output window, operand 0, single buffered']
    %12 = vsyncpa [#allocation3], 0
    %13 = vsyncpa [#allocation6], 0
    %14 = vsyncpa [#allocation4], 0
    // Predicated region
    $region2: #{tpu_custom_call.1} parent=1 // pred_check
      _
    $region3: #{tpu_custom_call.1} parent=1 // pred_check_branch
      %16 = sbr.rel (0) target = $region5
    $region4: #{tpu_custom_call.1} parent=1 // pred_region
      %s18 = ssub.s32 256, 256
      %19 = vsyncadd [#allocation3], %s18
      %s20 = sshll.u32 [#allocation2], 4
      %s21 = int_to_ptr.vmem [resolvable:$true] %s20
      %26 = dma.hbm_to_vmem [thread:$0]  %s0, 256, %s21, [#allocation3], 128, 128, 8
    $region5: #{tpu_custom_call.1} parent=1 // pred_fallthru
      _
    // Predicated region
    $region6: #{tpu_custom_call.1} parent=1 // pred_check
      _
    $region7: #{tpu_custom_call.1} parent=1 // pred_check_branch
      %28 = sbr.rel (0) target = $region9
    $region8: #{tpu_custom_call.1} parent=1 // pred_region
      _
    $region9: #{tpu_custom_call.1} parent=1 // pred_fallthru
      _
    // Predicated region
    $region10: #{tpu_custom_call.1} parent=1 // pred_check
      _
    $region11: #{tpu_custom_call.1} parent=1 // pred_check_branch
      %30 = sbr.rel (0) target = $region13
    $region12: #{tpu_custom_call.1} parent=1 // pred_region
      _
    $region13: #{tpu_custom_call.1} parent=1 // pred_fallthru
      _
    // Predicated region
    $region14: #{tpu_custom_call.1} parent=1 // pred_check
      _
    $region15: #{tpu_custom_call.1} parent=1 // pred_check_branch
      %32 = sbr.rel (0) target = $region17
    $region16: #{tpu_custom_call.1} parent=1 // pred_region
      %s34 = ssub.s32 384, 384
      %35 = vsyncadd [#allocation6], %s34
      %s36 = sshll.u32 [#allocation5], 4
      %s37 = int_to_ptr.vmem [resolvable:$true] %s36
      %42 = dma.hbm_to_vmem [thread:$0]  %s3, 384, %s37, [#allocation6], 192, 192, 12
    $region17: #{tpu_custom_call.1} parent=1 // pred_fallthru
      _
    // Predicated region
    $region18: #{tpu_custom_call.1} parent=1 // pred_check
      _
    $region19: #{tpu_custom_call.1} parent=1 // pred_check_branch
      %44 = sbr.rel (0) target = $region21
    $region20: #{tpu_custom_call.1} parent=1 // pred_region
      _
    $region21: #{tpu_custom_call.1} parent=1 // pred_fallthru
      _
    // Predicated region
    $region22: #{tpu_custom_call.1} parent=1 // pred_check
      _
    $region23: #{tpu_custom_call.1} parent=1 // pred_check_branch
      %46 = sbr.rel (0) target = $region25
    $region24: #{tpu_custom_call.1} parent=1 // pred_region
      %s48 = ssub.s32 2048, 2048
      %49 = vsyncadd [#allocation6], %s48
      %s50 = sshll.u32 [#allocation7], 4
      %s51 = int_to_ptr.vmem [resolvable:$true] %s50
      %56 = dma.hbm_to_vmem [thread:$0]  %s5, 2048, %s51, [#allocation6], 64, 64, 4
    $region25: #{tpu_custom_call.1} parent=1 // pred_fallthru
      _
    // Predicated region
    $region26: #{tpu_custom_call.1} parent=1 // pred_check
      _
    $region27: #{tpu_custom_call.1} parent=1 // pred_check_branch
      %58 = sbr.rel (0) target = $region29
    $region28: #{tpu_custom_call.1} parent=1 // pred_region
      _
    $region29: #{tpu_custom_call.1} parent=1 // pred_fallthru
      _
    // Predicated region
    $region30: #{tpu_custom_call.1} parent=1 // pred_check
      _
    $region31: #{tpu_custom_call.1} parent=1 // pred_check_branch
      %60 = sbr.rel (0) target = $region33
    $region32: #{tpu_custom_call.1} parent=1 // pred_region
      %61 = dma.done [#allocation3], 256
    $region33: #{tpu_custom_call.1} parent=1 // pred_fallthru
      _
    // Predicated region
    $region34: #{tpu_custom_call.1} parent=1 // pred_check
      _
    $region35: #{tpu_custom_call.1} parent=1 // pred_check_branch
      %63 = sbr.rel (0) target = $region37
    $region36: #{tpu_custom_call.1} parent=1 // pred_region
      %64 = dma.done [#allocation6], 384
    $region37: #{tpu_custom_call.1} parent=1 // pred_fallthru
      _
    // Predicated region
    $region38: #{tpu_custom_call.1} parent=1 // pred_check
      _
    $region39: #{tpu_custom_call.1} parent=1 // pred_check_branch
      %66 = sbr.rel (0) target = $region41
    $region40: #{tpu_custom_call.1} parent=1 // pred_region
      %67 = dma.done [#allocation6], 2048
    $region41: #{tpu_custom_call.1} parent=1 // pred_fallthru
      _
    %v69 = vld [vmem:[#allocation2] sm:$0xff]
    %v70 = vld [vmem:[#allocation2 + $0x8] sm:$0xff]
    %v71 = vld [vmem:[%s1] sm:$0x1]
    %v73 = vlaneseq
    %v74 = vshrl.u32 %v73, 7
    %v75 = vsub.s32 0, %v74
    %v76 = vrot.slane %v71, %v75
    %v78 = vmul.f32 %v69, %v76
    %v79 = vmul.f32 %v70, %v76
    %v80 = vld [vmem:[%s2] sm:$0x1]
    %v82 = vlaneseq
    %v83 = vshrl.u32 %v82, 7
    %v84 = vsub.s32 0, %v83
    %v85 = vrot.slane %v80, %v84
    %v87 = vadd.f32 %v78, %v85
    %v88 = vadd.f32 %v79, %v85
    %v89 = vmax.f32 %v87, 0.0
    %v90 = vmax.f32 %v88, 0.0
    %v91 = vpack.c.bf16 %v90, %v89
    %v92 = vld [vmem:[#allocation5] sm:$0xff]
    %v93 = vld [vmem:[#allocation5 + $0x8] sm:$0xf]
    %v94 = vld [vmem:[#allocation5 + $0xc] sm:$0xff]
    %v95 = vld [vmem:[#allocation5 + $0x14] sm:$0xf]
    %v96 = vld [vmem:[%s4] sm:$0x7]
    %v98 = vlaneseq
    %v99 = vshrl.u32 %v98, 7
    %v100 = vsub.s32 0, %v99
    %v101 = vrot.slane %v96, %v100
    %v102 = vlaneseq
    %v103 = vshrl.u32 %v102, 7
    %v104 = vsub.s32 1, %v103
    %v105 = vrot.slane %v96, %v104
    %v106 = vlaneseq
    %v107 = vshrl.u32 %v106, 7
    %v108 = vsub.s32 2, %v107
    %v109 = vrot.slane %v96, %v108
    %v117 = vunpack.c.l.b16 %v92
    %v118 = vunpack.c.h.b16 %v92
    %v119 = vunpack.c.l.b16 %v93
    %v120 = vunpack.c.l.b16 %v94
    %v121 = vunpack.c.h.b16 %v94
    %v122 = vunpack.c.l.b16 %v95
    %v123 = vpack.c.b16 %v120, %v117
    %v124 = vpack.c.b16 %v121, %v118
    %v125 = vpack.c.b16 %v122, %v119
    %vm129 = vcmask 130048
    %v131 = vsel %vm129, %v91, 0
    %133 = vmatprep.subr.bf16.mxu0 0
    %134 = vmatpush1.bf16.msra.mxu0 0
    %135 = vmatprep.subr.bf16.mxu0 0
    %136 = vmatpush1.bf16.msra.mxu0 0
    %137 = vmatprep.subr.bf16.mxu0 0
    %138 = vmatpush1.bf16.msra.mxu0 0
    %139 = vmatprep.subr.bf16.mxu0 0
    %140 = vmatpush1.bf16.msra.mxu0 0
    %141 = vmatprep.subr.bf16.mxu0 0
    %142 = vmatpush1.bf16.msra.mxu0 0
    %143 = vmatprep.subr.bf16.mxu0 0
    %144 = vmatpush1.bf16.msra.mxu0 0
    %145 = vmatprep.subr.bf16.mxu0 0
    %146 = vmatpush1.bf16.msra.mxu0 0
    %147 = vmatprep.subr.bf16.mxu0 %v124
    %148 = vmatpush1.bf16.msra.mxu0 %v123
    %149 = vmatprep.subr.bf16.mxu0 0
    %150 = vmatpush2.bf16.msra.mxu0 0
    %151 = vmatprep.subr.bf16.mxu0 0
    %152 = vmatpush2.bf16.msra.mxu0 0
    %153 = vmatprep.subr.bf16.mxu0 0
    %154 = vmatpush2.bf16.msra.mxu0 0
    %155 = vmatprep.subr.bf16.mxu0 0
    %156 = vmatpush2.bf16.msra.mxu0 0
    %157 = vmatprep.subr.bf16.mxu0 0
    %158 = vmatpush2.bf16.msra.mxu0 0
    %159 = vmatprep.subr.bf16.mxu0 0
    %160 = vmatpush2.bf16.msra.mxu0 0
    %161 = vmatprep.subr.bf16.mxu0 0
    %162 = vmatpush2.bf16.msra.mxu0 0
    %163 = vmatprep.subr.bf16.mxu0 0
    %164 = vmatpush2.bf16.msra.mxu0 0
    %165 = vmatprep.mubr.bf16.mxu0 0
    %166 = vmatmul.mubr.bf16.gmra.mxu0 %v131
    %v167 = vpop.f32.mrf.mxu0
    %v168 = vadd.f32 %v101, %v167
    %v169 = vpop.f32.mrf.mxu0
    %v170 = vadd.f32 %v105, %v169
    %v171 = vpop.f32.mrf.mxu0
    %v172 = vadd.f32 %v101, %v171
    %v173 = vpop.f32.mrf.mxu0
    %v174 = vadd.f32 %v105, %v173
    %175 = vdwg.mxu0
    %176 = vmatprep.subr.bf16.mxu0 0
    %177 = vmatpush1.bf16.msra.mxu0 0
    %178 = vmatprep.subr.bf16.mxu0 0
    %179 = vmatpush1.bf16.msra.mxu0 0
    %180 = vmatprep.subr.bf16.mxu0 0
    %181 = vmatpush1.bf16.msra.mxu0 0
    %182 = vmatprep.subr.bf16.mxu0 0
    %183 = vmatpush1.bf16.msra.mxu0 0
    %184 = vmatprep.subr.bf16.mxu0 0
    %185 = vmatpush1.bf16.msra.mxu0 0
    %186 = vmatprep.subr.bf16.mxu0 0
    %187 = vmatpush1.bf16.msra.mxu0 0
    %188 = vmatprep.subr.bf16.mxu0 0
    %189 = vmatpush1.bf16.msra.mxu0 0
    %190 = vmatprep.subr.bf16.mxu0 0
    %191 = vmatpush1.bf16.msra.mxu0 %v125
    %192 = vmatprep.subr.bf16.mxu0 0
    %193 = vmatpush2.bf16.msra.mxu0 0
    %194 = vmatprep.subr.bf16.mxu0 0
    %195 = vmatpush2.bf16.msra.mxu0 0
    %196 = vmatprep.subr.bf16.mxu0 0
    %197 = vmatpush2.bf16.msra.mxu0 0
    %198 = vmatprep.subr.bf16.mxu0 0
    %199 = vmatpush2.bf16.msra.mxu0 0
    %200 = vmatprep.subr.bf16.mxu0 0
    %201 = vmatpush2.bf16.msra.mxu0 0
    %202 = vmatprep.subr.bf16.mxu0 0
    %203 = vmatpush2.bf16.msra.mxu0 0
    %204 = vmatprep.subr.bf16.mxu0 0
    %205 = vmatpush2.bf16.msra.mxu0 0
    %206 = vmatprep.subr.bf16.mxu0 0
    %207 = vmatpush2.bf16.msra.mxu0 0
    %208 = vmatprep.mubr.bf16.mxu0 0
    %209 = vmatmul.mubr.bf16.gmra.mxu0 %v131
    %v210 = vpop.f32.mrf.mxu0
    %v211 = vadd.f32 %v109, %v210
    %v212 = vpop.f32.mrf.mxu0
    %v213 = vpop.f32.mrf.mxu0
    %v214 = vadd.f32 %v109, %v213
    %v215 = vpop.f32.mrf.mxu0
    %216 = vdwg.mxu0
    %v217 = vmax.f32 %v170, 0.0
    %v218 = vmax.f32 %v211, 0.0
    %v219 = vmax.f32 %v174, 0.0
    %v220 = vmax.f32 %v214, 0.0
    %v221 = vpack.c.bf16 %v219, %v217
    %v222 = vpack.c.bf16 %v220, %v218
    %v223 = vld [vmem:[#allocation7] sm:$0xf]
    %v224 = vld [vmem:[#allocation7 + $0x4] sm:$0xf]
    %v225 = vld [vmem:[#allocation7 + $0x8] sm:$0xf]
    %v226 = vld [vmem:[#allocation7 + $0xc] sm:$0xf]
    %v227 = vld [vmem:[#allocation7 + $0x10] sm:$0xf]
    %v228 = vld [vmem:[#allocation7 + $0x14] sm:$0xf]
    %v229 = vld [vmem:[#allocation7 + $0x18] sm:$0xf]
    %v230 = vld [vmem:[#allocation7 + $0x1c] sm:$0xf]
    %v231 = vld [vmem:[#allocation7 + $0x20] sm:$0xf]
    %v232 = vld [vmem:[#allocation7 + $0x24] sm:$0xf]
    %v233 = vld [vmem:[#allocation7 + $0x28] sm:$0xf]
    %v234 = vld [vmem:[#allocation7 + $0x2c] sm:$0xf]
    %v235 = vld [vmem:[#allocation7 + $0x30] sm:$0xf]
    %v236 = vld [vmem:[#allocation7 + $0x34] sm:$0xf]
    %v237 = vld [vmem:[#allocation7 + $0x38] sm:$0xf]
    %v238 = vld [vmem:[#allocation7 + $0x3c] sm:$0xf]
    %v239 = vld [vmem:[#allocation7 + $0x40] sm:$0xf]
    %v240 = vld [vmem:[#allocation7 + $0x44] sm:$0xf]
    %v241 = vld [vmem:[#allocation7 + $0x48] sm:$0xf]
    %v242 = vld [vmem:[#allocation7 + $0x4c] sm:$0xf]
    %v243 = vld [vmem:[#allocation7 + $0x50] sm:$0xf]
    %v244 = vld [vmem:[#allocation7 + $0x54] sm:$0xf]
    %v245 = vld [vmem:[#allocation7 + $0x58] sm:$0xf]
    %v246 = vld [vmem:[#allocation7 + $0x5c] sm:$0xf]
    %v247 = vld [vmem:[#allocation7 + $0x60] sm:$0xf]
    %v248 = vld [vmem:[#allocation7 + $0x64] sm:$0xf]
    %v249 = vld [vmem:[#allocation7 + $0x68] sm:$0xf]
    %v250 = vld [vmem:[#allocation7 + $0x6c] sm:$0xf]
    %v251 = vld [vmem:[#allocation7 + $0x70] sm:$0xf]
    %v252 = vld [vmem:[#allocation7 + $0x74] sm:$0xf]
    %v253 = vld [vmem:[#allocation7 + $0x78] sm:$0xf]
    %v254 = vld [vmem:[#allocation7 + $0x7c] sm:$0xf]
    %v255 = vld [vmem:[%s6] sm:$0x1]
    %v257 = vlaneseq
    %v258 = vshrl.u32 %v257, 7
    %v259 = vsub.s32 0, %v258
    %v260 = vrot.slane %v255, %v259
    %v294 = vunpack.c.l.b16 %v223
    %v295 = vunpack.c.l.b16 %v224
    %v296 = vunpack.c.l.b16 %v225
    %v297 = vunpack.c.l.b16 %v226
    %v298 = vunpack.c.l.b16 %v227
    %v299 = vunpack.c.l.b16 %v228
    %v300 = vunpack.c.l.b16 %v229
    %v301 = vunpack.c.l.b16 %v230
    %v302 = vunpack.c.l.b16 %v231
    %v303 = vunpack.c.l.b16 %v232
    %v304 = vunpack.c.l.b16 %v233
    %v305 = vunpack.c.l.b16 %v234
    %v306 = vunpack.c.l.b16 %v235
    %v307 = vunpack.c.l.b16 %v236
    %v308 = vunpack.c.l.b16 %v237
    %v309 = vunpack.c.l.b16 %v238
    %v310 = vunpack.c.l.b16 %v239
    %v311 = vunpack.c.l.b16 %v240
    %v312 = vunpack.c.l.b16 %v241
    %v313 = vunpack.c.l.b16 %v242
    %v314 = vunpack.c.l.b16 %v243
    %v315 = vunpack.c.l.b16 %v244
    %v316 = vunpack.c.l.b16 %v245
    %v317 = vunpack.c.l.b16 %v246
    %v318 = vunpack.c.l.b16 %v247
    %v319 = vunpack.c.l.b16 %v248
    %v320 = vunpack.c.l.b16 %v249
    %v321 = vunpack.c.l.b16 %v250
    %v322 = vunpack.c.l.b16 %v251
    %v323 = vunpack.c.l.b16 %v252
    %v324 = vunpack.c.l.b16 %v253
    %v325 = vunpack.c.l.b16 %v254
    %v326 = vpack.c.b16 %v295, %v294
    %v327 = vpack.c.b16 %v297, %v296
    %v328 = vpack.c.b16 %v299, %v298
    %v329 = vpack.c.b16 %v301, %v300
    %v330 = vpack.c.b16 %v303, %v302
    %v331 = vpack.c.b16 %v305, %v304
    %v332 = vpack.c.b16 %v307, %v306
    %v333 = vpack.c.b16 %v309, %v308
    %v334 = vpack.c.b16 %v311, %v310
    %v335 = vpack.c.b16 %v313, %v312
    %v336 = vpack.c.b16 %v315, %v314
    %v337 = vpack.c.b16 %v317, %v316
    %v338 = vpack.c.b16 %v319, %v318
    %v339 = vpack.c.b16 %v321, %v320
    %v340 = vpack.c.b16 %v323, %v322
    %v341 = vpack.c.b16 %v325, %v324
    %358 = vmatprep.subr.bf16.mxu0 0
    %359 = vmatpush1.bf16.msra.mxu0 %v333
    %360 = vmatprep.subr.bf16.mxu0 0
    %361 = vmatpush1.bf16.msra.mxu0 %v332
    %362 = vmatprep.subr.bf16.mxu0 0
    %363 = vmatpush1.bf16.msra.mxu0 %v331
    %364 = vmatprep.subr.bf16.mxu0 0
    %365 = vmatpush1.bf16.msra.mxu0 %v330
    %366 = vmatprep.subr.bf16.mxu0 0
    %367 = vmatpush1.bf16.msra.mxu0 %v329
    %368 = vmatprep.subr.bf16.mxu0 0
    %369 = vmatpush1.bf16.msra.mxu0 %v328
    %370 = vmatprep.subr.bf16.mxu0 0
    %371 = vmatpush1.bf16.msra.mxu0 %v327
    %372 = vmatprep.subr.bf16.mxu0 0
    %373 = vmatpush1.bf16.msra.mxu0 %v326
    %374 = vmatprep.subr.bf16.mxu0 0
    %375 = vmatpush2.bf16.msra.mxu0 %v341
    %376 = vmatprep.subr.bf16.mxu0 0
    %377 = vmatpush2.bf16.msra.mxu0 %v340
    %378 = vmatprep.subr.bf16.mxu0 0
    %379 = vmatpush2.bf16.msra.mxu0 %v339
    %380 = vmatprep.subr.bf16.mxu0 0
    %381 = vmatpush2.bf16.msra.mxu0 %v338
    %382 = vmatprep.subr.bf16.mxu0 0
    %383 = vmatpush2.bf16.msra.mxu0 %v337
    %384 = vmatprep.subr.bf16.mxu0 0
    %385 = vmatpush2.bf16.msra.mxu0 %v336
    %386 = vmatprep.subr.bf16.mxu0 0
    %387 = vmatpush2.bf16.msra.mxu0 %v335
    %388 = vmatprep.subr.bf16.mxu0 0
    %389 = vmatpush2.bf16.msra.mxu0 %v334
    %390 = vmatprep.mubr.bf16.mxu0 %v222
    %391 = vmatmul.mubr.bf16.gmra.mxu0 %v221
    %v392 = vpop.f32.mrf.mxu0
    %v393 = vadd.f32 %v260, %v392
    %v394 = vpop.f32.mrf.mxu0
    %v395 = vpop.f32.mrf.mxu0
    %v396 = vadd.f32 %v260, %v395
    %v397 = vpop.f32.mrf.mxu0
    %398 = vdwg.mxu0
    %v399 = vadd.f32 %v393, %v168
    %v400 = vadd.f32 %v396, %v172
    %401 = vst [vmem:[#allocation8] sm:$0xff] %v399
    %402 = vst [vmem:[#allocation8 + $0x8] sm:$0xff] %v400
    // Predicated region
    $region42: #{tpu_custom_call.1} parent=1 // pred_check
      _
    $region43: #{tpu_custom_call.1} parent=1 // pred_check_branch
      %404 = sbr.rel (0) target = $region45
    $region44: #{tpu_custom_call.1} parent=1 // pred_region
      %s406 = ssub.s32 256, 256
      %407 = vsyncadd [#allocation4], %s406
      %s408 = sshll.u32 [#allocation8], 4
      %s409 = int_to_ptr.vmem [resolvable:$true] %s408
      %414 = dma.vmem_to_hbm [thread:$0]  %s409, 256, %s7, [#allocation4], 128, 128, 8
    $region45: #{tpu_custom_call.1} parent=1 // pred_fallthru
      _
    // Predicated region
    $region46: #{tpu_custom_call.1} parent=1 // pred_check
      _
    $region47: #{tpu_custom_call.1} parent=1 // pred_check_branch
      %416 = sbr.rel (0) target = $region49
    $region48: #{tpu_custom_call.1} parent=1 // pred_region
      %417 = dma.done [#allocation4], 256
    $region49: #{tpu_custom_call.1} parent=1 // pred_fallthru
      _
    %418 = vsyncpa [#allocation3], 1
    %419 = vsyncpa [#allocation6], 1
    %420 = vsyncpa [#allocation4], 1

</llo_original>
